<compile_context>
chip_gen: v6e
topology: v6e:2x2x1
jax: 0.10.0
libtpu: 0.0.40
codegen_flags: <defaults>
</compile_context>

<pallas_src>
import jax
import jax.numpy as jnp
from jax import lax
from jax.experimental import pallas as pl
from jax.experimental.pallas import tpu as pltpu


# --------------------------------------------------------------------------- #
# Kernel
# --------------------------------------------------------------------------- #
def _linear_sigmoid_kernel(x_ref, w_ref, b_ref, o_ref):
    """One (i, j, k) grid step of sigmoid(x @ W_kn + b).

    x_ref: (tm, tk)   operand dtype (f32 or bf16)
    w_ref: (tk, tn)   operand dtype, weight already in (K, N) layout
    b_ref: (1,  tn)   f32
    o_ref: (tm, tn)   f32 — doubles as the K-reduction accumulator (its block
                      index is independent of k, so it stays resident).
    """
    k = pl.program_id(2)

    @pl.when(k == 0)
    def _():
        o_ref[...] = jnp.zeros_like(o_ref)

    # MXU-natural contraction; f32 accumulation regardless of operand dtype.
    o_ref[...] += jnp.dot(x_ref[...], w_ref[...],
                          preferred_element_type=jnp.float32)

    @pl.when(k == pl.num_programs(2) - 1)
    def _():
        z = o_ref[...] + b_ref[...]                 # f32 epilogue (v5e-safe)
        # sigmoid(z) == 0.5 * (tanh(z/2) + 1): one EUP op, no VPU divide.
        o_ref[...] = (0.5 * (jnp.tanh(0.5 * z) + 1.0)).astype(o_ref.dtype)


# --------------------------------------------------------------------------- #
# Tile planning
# --------------------------------------------------------------------------- #
def _vmem_capacity_bytes():
    """Physical VMEM per core; conservative (v7x = 64 MiB) if query fails."""
    try:
        cap = getattr(pltpu.get_tpu_info(), "vmem_capacity_bytes", None)
        if cap:
            return int(cap)
    except Exception:
        pass
    return 64 << 20


def _pick_tile(dim, pref, granule):
    """Largest tile <= pref that divides `dim` and is a multiple of `granule`
    (the (8, 128) layout granule).  Falls back to the full dim only if no such
    divisor exists (block == full array dim is always legal).
    Note: a cdiv grid with a masked tail block would be better than the
    full-dim fallback for huge prime-ish dims; not needed for this module.
    """
    if dim <= pref:
        return dim
    t = (pref // granule) * granule
    while t >= granule:
        if dim % t == 0:
            return t
        t -= granule
    return dim


def _plan_tiles(B, K, N, op_bytes, out_bytes, vmem_budget):
    """(tm, tn, tk) sized for reuse, shrunk (tk, then tm, then tn) to fit the
    double-buffered VMEM footprint inside `vmem_budget`."""
    tm_pref, tn_pref, tk_pref = 512, 512, 512   # v5e tip: prefer tn<=256 if tuning there

    def pick():
        return (_pick_tile(B, tm_pref, 8),
                _pick_tile(N, tn_pref, 128),
                _pick_tile(K, tk_pref, 128))

    def footprint(tm, tn, tk):
        # double-buffered x & w input tiles + (conservatively) double-buffered
        # f32 output tile, which also serves as the accumulator.
        return 2 * (tm * tk + tn * tk) * op_bytes + 2 * tm * tn * out_bytes

    tm, tn, tk = pick()
    while footprint(tm, tn, tk) > vmem_budget:
        if tk_pref > 128:
            tk_pref //= 2
        elif tm_pref > 8:
            tm_pref //= 2
        elif tn_pref > 128:
            tn_pref //= 2
        else:
            break                                  # nothing left to shrink
        tm, tn, tk = pick()
    return tm, tn, tk, footprint(tm, tn, tk)


# --------------------------------------------------------------------------- #
# Wrappers
# --------------------------------------------------------------------------- #
def simple_neuron_forward_pallas(x, weight, bias, *, use_bf16=None):
    """sigmoid(x @ weight.T + bias) via the Pallas kernel.

    x:      (B, K) float32
    weight: (N, K) float32, PyTorch (out_features, in_features) layout
    bias:   (N,)   float32
    Returns (B, N) float32.
    """
    B, K = x.shape
    N, K2 = weight.shape
    assert K == K2, "in_features mismatch"

    if use_bf16 is None:
        use_bf16 = K >= 256            # where MXU throughput / HBM BW matter
    op_dtype = jnp.bfloat16 if use_bf16 else jnp.float32

    # One wrapper-side pass over the operands: dtype cast (halves HBM traffic
    # when bf16) fused with the one-time weight transpose to (K, N).
    x_op = x.astype(op_dtype)
    w_op = weight.T.astype(op_dtype)
    b2 = bias.astype(jnp.float32).reshape(1, N)

    op_bytes = jnp.dtype(op_dtype).itemsize
    vmem_cap = _vmem_capacity_bytes()
    vmem_budget = vmem_cap // 2                     # leave headroom for Mosaic
    tm, tn, tk, fp = _plan_tiles(B, K, N, op_bytes, 4, vmem_budget)

    grid = (B // tm, N // tn, K // tk)

    # Raise the scoped VMEM budget explicitly for the larger tiles, but stay
    # well under physical capacity (v7x: 64 MiB).
    vmem_limit = int(min(vmem_cap * 3 // 4, max(32 << 20, fp + (16 << 20))))

    return pl.pallas_call(
        _linear_sigmoid_kernel,
        out_shape=jax.ShapeDtypeStruct((B, N), jnp.float32),
        grid_spec=pltpu.PrefetchScalarGridSpec(
            num_scalar_prefetch=0,
            grid=grid,
            in_specs=[
                pl.BlockSpec((tm, tk), lambda i, j, k: (i, k)),   # x   (B, K)
                pl.BlockSpec((tk, tn), lambda i, j, k: (k, j)),   # W^T (K, N)
                pl.BlockSpec((1, tn), lambda i, j, k: (0, j)),    # bias
            ],
            out_specs=pl.BlockSpec((tm, tn), lambda i, j, k: (i, j)),
        ),
        compiler_params=pltpu.CompilerParams(
            dimension_semantics=("parallel", "parallel", "arbitrary"),
            vmem_limit_bytes=vmem_limit,
        ),
    )(x_op, w_op, b2)


def simple_neuron_forward(x, weight, bias, *, force_pallas=False, use_bf16=None):
    """Dispatcher: tiny problems go to plain XLA (a standalone pallas_call is
    pure launch/DMA overhead there, with a lane-sparse output); everything
    else uses the Pallas kernel."""
    B, K = x.shape
    N = weight.shape[0]
    if not force_pallas and (B * K * N) < (1 << 21):
        return jax.nn.sigmoid(x @ weight.T + bias)
    return simple_neuron_forward_pallas(x, weight, bias, use_bf16=use_bf16)


# --------------------------------------------------------------------------- #
# Self-test
# --------------------------------------------------------------------------- #
if __name__ == "__main__":
    # --- Test 1: module-default shape (n_neurons=32, batch=8), f32 operands,
    #     forcing the Pallas path so the kernel itself is exercised. ---------
    n_neurons, batch = 32, 8
    key = jax.random.PRNGKey(0)
    kx, kw, kb = jax.random.split(key, 3)

    bound = 1.0 / jnp.sqrt(jnp.float32(n_neurons))
    weight = jax.random.uniform(kw, (n_neurons, n_neurons), jnp.float32, -bound, bound)
    bias = jax.random.uniform(kb, (n_neurons,), jnp.float32, -bound, bound)
    x = jax.random.normal(kx, (batch, n_neurons), jnp.float32)

    out = jax.block_until_ready(
        simple_neuron_forward(x, weight, bias, force_pallas=True))
    ref = jax.nn.sigmoid(x @ weight.T + bias)
    assert out.shape == (batch, n_neurons)
    assert jnp.allclose(out, ref, atol=1e-5, rtol=1e-5), "small-shape mismatch"

    # Default dispatch at this size goes through plain XLA fusion; check it too.
    out_xla = jax.block_until_ready(simple_neuron_forward(x, weight, bias))
    assert jnp.allclose(out_xla, ref, atol=1e-5, rtol=1e-5)

    # --- Test 2: larger shape exercising the tiled bf16-operand path
    #     (grid = (1, 2, 2): two parallel N blocks + K-reduction accumulation).
    n2, batch2 = 1024, 512
    k2x, k2w, k2b = jax.random.split(jax.random.PRNGKey(1), 3)
    bound2 = 1.0 / jnp.sqrt(jnp.float32(n2))
    w2 = jax.random.uniform(k2w, (n2, n2), jnp.float32, -bound2, bound2)
    b2v = jax.random.uniform(k2b, (n2,), jnp.float32, -bound2, bound2)
    x2 = jax.random.normal(k2x, (batch2, n2), jnp.float32)

    out2 = jax.block_until_ready(simple_neuron_forward(x2, w2, b2v))
    ref2 = jax.nn.sigmoid(
        jnp.dot(x2, w2.T, precision=lax.Precision.HIGHEST) + b2v)
    assert out2.shape == (batch2, n2)
    # bf16 MXU operands with f32 accumulation: sigmoid-output error ~1e-3.
    assert jnp.allclose(out2, ref2, atol=2e-2, rtol=2e-2), "tiled-shape mismatch"

    print("KERNEL_OK")
</pallas_src>

<mosaic_0001>
module attributes {stable_mosaic.version = 11 : i64} {
  func.func @_linear_sigmoid_kernel(%arg0: i32, %arg1: i32, %arg2: i32, %arg3: memref<8x32xf32, #tpu.memory_space<vmem>>, %arg4: memref<32x32xf32, #tpu.memory_space<vmem>>, %arg5: memref<1x32xf32, #tpu.memory_space<vmem>>, %arg6: memref<8x32xf32, #tpu.memory_space<vmem>>) attributes {dimension_semantics = [#tpu.dimension_semantics<parallel>, #tpu.dimension_semantics<parallel>, #tpu.dimension_semantics<arbitrary>], iteration_bounds = array<i64: 1, 1, 1>, scalar_prefetch = 0 : i64, scratch_operands = 0 : i64, tpu.core_type = #tpu.core_type<tc>, window_params = [{transform_indices = @transform_0, window_bounds = array<i64: 8, 32>}, {transform_indices = @transform_1, window_bounds = array<i64: 32, 32>}, {transform_indices = @transform_2, window_bounds = array<i64: 1, 32>}, {transform_indices = @transform_3, window_bounds = array<i64: 8, 32>}]} {
    %c0_i32 = arith.constant 0 : i32
    %0 = arith.cmpi eq, %arg2, %c0_i32 : i32
    %1 = arith.extui %0 : i1 to i32
    %c0_i32_0 = arith.constant 0 : i32
    %2 = arith.cmpi ne, %1, %c0_i32_0 : i32
    scf.if %2 {
      %cst_10 = arith.constant 0.000000e+00 : f32
      %12 = vector.broadcast %cst_10 : f32 to vector<8x32xf32>
      %c0_11 = arith.constant 0 : index
      %c0_12 = arith.constant 0 : index
      %13 = vector.load %arg6[%c0_11, %c0_12] : memref<8x32xf32, #tpu.memory_space<vmem>>, vector<8x32xf32>
      tpu.vector_store %arg6[%c0_11, %c0_12], %12 {strides = array<i32>} : memref<8x32xf32, #tpu.memory_space<vmem>>, vector<8x32xf32>,
    } else {
    }
    %c0 = arith.constant 0 : index
    %c0_1 = arith.constant 0 : index
    %3 = vector.load %arg6[%c0, %c0_1] : memref<8x32xf32, #tpu.memory_space<vmem>>, vector<8x32xf32>
    %c0_2 = arith.constant 0 : index
    %c0_3 = arith.constant 0 : index
    %4 = vector.load %arg3[%c0_2, %c0_3] : memref<8x32xf32, #tpu.memory_space<vmem>>, vector<8x32xf32>
    %c0_4 = arith.constant 0 : index
    %c0_5 = arith.constant 0 : index
    %5 = vector.load %arg4[%c0_4, %c0_5] : memref<32x32xf32, #tpu.memory_space<vmem>>, vector<32x32xf32>
    %cst = arith.constant dense<0.000000e+00> : vector<8x32xf32>
    %6 = tpu.matmul %4, %5, %cst {dimension_numbers = #tpu.dot_dimension_numbers<[1], [0], [0], [1], [0, 0, 1, 1], [], []>} : vector<8x32xf32>, vector<32x32xf32>, vector<8x32xf32> -> vector<8x32xf32>
    %7 = arith.addf %3, %6 : vector<8x32xf32>
    %c0_6 = arith.constant 0 : index
    %c0_7 = arith.constant 0 : index
    %8 = vector.load %arg6[%c0_6, %c0_7] : memref<8x32xf32, #tpu.memory_space<vmem>>, vector<8x32xf32>
    tpu.vector_store %arg6[%c0_6, %c0_7], %7 {strides = array<i32>} : memref<8x32xf32, #tpu.memory_space<vmem>>, vector<8x32xf32>,
    %c0_i32_8 = arith.constant 0 : i32
    %9 = arith.cmpi eq, %arg2, %c0_i32_8 : i32
    %10 = arith.extui %9 : i1 to i32
    %c0_i32_9 = arith.constant 0 : i32
    %11 = arith.cmpi ne, %10, %c0_i32_9 : i32
    scf.if %11 {
      %c0_10 = arith.constant 0 : index
      %c0_11 = arith.constant 0 : index
      %12 = vector.load %arg6[%c0_10, %c0_11] : memref<8x32xf32, #tpu.memory_space<vmem>>, vector<8x32xf32>
      %c0_12 = arith.constant 0 : index
      %c0_13 = arith.constant 0 : index
      %13 = vector.load %arg5[%c0_12, %c0_13] : memref<1x32xf32, #tpu.memory_space<vmem>>, vector<1x32xf32>
      %14 = vector.broadcast %13 : vector<1x32xf32> to vector<8x32xf32>
      %15 = arith.addf %12, %14 : vector<8x32xf32>
      %cst_14 = arith.constant 5.000000e-01 : f32
      %16 = vector.broadcast %cst_14 : f32 to vector<8x32xf32>
      %17 = arith.mulf %16, %15 : vector<8x32xf32>
      %18 = math.tanh %17 : vector<8x32xf32>
      %cst_15 = arith.constant 1.000000e+00 : f32
      %19 = vector.broadcast %cst_15 : f32 to vector<8x32xf32>
      %20 = arith.addf %18, %19 : vector<8x32xf32>
      %cst_16 = arith.constant 5.000000e-01 : f32
      %21 = vector.broadcast %cst_16 : f32 to vector<8x32xf32>
      %22 = arith.mulf %21, %20 : vector<8x32xf32>
      %c0_17 = arith.constant 0 : index
      %c0_18 = arith.constant 0 : index
      %23 = vector.load %arg6[%c0_17, %c0_18] : memref<8x32xf32, #tpu.memory_space<vmem>>, vector<8x32xf32>
      tpu.vector_store %arg6[%c0_17, %c0_18], %22 {strides = array<i32>} : memref<8x32xf32, #tpu.memory_space<vmem>>, vector<8x32xf32>,
    } else {
    }
    return
  }
  func.func @transform_0(%arg0: i32, %arg1: i32, %arg2: i32) -> (i32, i32) {
    %c0_i32 = arith.constant 0 : i32
    return %arg0, %arg2 : i32, i32
  }
  func.func @transform_1(%arg0: i32, %arg1: i32, %arg2: i32) -> (i32, i32) {
    %c0_i32 = arith.constant 0 : i32
    return %arg2, %arg1 : i32, i32
  }
  func.func @transform_2(%arg0: i32, %arg1: i32, %arg2: i32) -> (i32, i32) {
    %c0_i32 = arith.constant 0 : i32
    %c0_i32_0 = arith.constant 0 : i32
    return %c0_i32, %arg1 : i32, i32
  }
  func.func @transform_3(%arg0: i32, %arg1: i32, %arg2: i32) -> (i32, i32) {
    %c0_i32 = arith.constant 0 : i32
    return %arg0, %arg1 : i32, i32
  }
}

</mosaic_0001>

<llo_original>
// kernel: tpu_custom_call.1
$region0: #{tpu_custom_call.1}
  #allocation0 [shape = 'u32[]', space=smem, size = 0x4, offset = 0x4, fixed_abs, tag = 'smem constant byte address 0x4 - core index']
  #allocation1 [shape = 'u32[144,128]{1,0:T(1,128)}', space=vmem, size = 0x12000, scoped, tag = 'internal scratch']
  %s0 = inlined_call_operand.hbm [shape: f32[8,32], index: 0, kind: input, shape index: {}]
  %s1 = inlined_call_operand.hbm [shape: f32[32,32], index: 1, kind: input, shape index: {}]
  %s2 = inlined_call_operand.vmem [shape: f32[1,32], index: 2, kind: input, shape index: {}]
  %s3 = inlined_call_operand.hbm [shape: f32[8,32], index: 3, kind: output, shape index: {}]
  %s4 = sld [smem:[#allocation0]]
  $region38: #{tpu_custom_call.1} parent=0
    _
  %s6 = ssub.s32 1, %s4
  %s7 = scalar_select 0, %s6, %s4
  $region1: #{tpu_custom_call.1} parent=0
    #allocation2 [shape = 'u8[4096]{0}', space=vmem, size = 0x1000, scoped, tag = 'input window, operand 0, single buffered']
    #allocation3 [shape = 's32[1]{0}', space=sflag, size = 0x4, scoped, tag = 'scoped memory for tpu_custom_call.1']
    #allocation4 [shape = 's32[1]{0}', space=sflag, size = 0x4, scoped, tag = 'scoped memory for tpu_custom_call.1']
    #allocation5 [shape = 'u8[16384]{0}', space=vmem, size = 0x4000, scoped, tag = 'input window, operand 1, single buffered']
    #allocation6 [shape = 's32[1]{0}', space=sflag, size = 0x4, scoped, tag = 'scoped memory for tpu_custom_call.1']
    #allocation7 [shape = 'u8[4096]{0}', space=vmem, size = 0x1000, scoped, tag = 'output window, operand 0, single buffered']
    %8 = vsyncpa [#allocation3], 0
    %9 = vsyncpa [#allocation6], 0
    %10 = vsyncpa [#allocation4], 0
    // Predicated region
    $region2: #{tpu_custom_call.1} parent=1 // pred_check
      _
    $region3: #{tpu_custom_call.1} parent=1 // pred_check_branch
      %12 = sbr.rel (0) target = $region5
    $region4: #{tpu_custom_call.1} parent=1 // pred_region
      %s14 = ssub.s32 128, 128
      %15 = vsyncadd [#allocation3], %s14
      %s17 = sshll.u32 [#allocation2], 4
      %s18 = int_to_ptr.vmem [resolvable:$true] %s17
      %20 = dma.hbm_to_vmem [thread:$0]  %s0, 128, %s18, [#allocation3]
    $region5: #{tpu_custom_call.1} parent=1 // pred_fallthru
      _
    // Predicated region
    $region6: #{tpu_custom_call.1} parent=1 // pred_check
      _
    $region7: #{tpu_custom_call.1} parent=1 // pred_check_branch
      %22 = sbr.rel (0) target = $region9
    $region8: #{tpu_custom_call.1} parent=1 // pred_region
      %s24 = ssub.s32 512, 512
      %25 = vsyncadd [#allocation6], %s24
      %s26 = sshll.u32 [#allocation5], 4
      %s27 = int_to_ptr.vmem [resolvable:$true] %s26
      %32 = dma.hbm_to_vmem [thread:$0]  %s1, 512, %s27, [#allocation6], 128, 128, 8
    $region9: #{tpu_custom_call.1} parent=1 // pred_fallthru
      _
    // Predicated region
    $region10: #{tpu_custom_call.1} parent=1 // pred_check
      _
    $region11: #{tpu_custom_call.1} parent=1 // pred_check_branch
      %34 = sbr.rel (0) target = $region13
    $region12: #{tpu_custom_call.1} parent=1 // pred_region
      _
    $region13: #{tpu_custom_call.1} parent=1 // pred_fallthru
      _
    // Predicated region
    $region14: #{tpu_custom_call.1} parent=1 // pred_check
      _
    $region15: #{tpu_custom_call.1} parent=1 // pred_check_branch
      %36 = sbr.rel (0) target = $region17
    $region16: #{tpu_custom_call.1} parent=1 // pred_region
      %37 = dma.done [#allocation3], 128
    $region17: #{tpu_custom_call.1} parent=1 // pred_fallthru
      _
    // Predicated region
    $region18: #{tpu_custom_call.1} parent=1 // pred_check
      _
    $region19: #{tpu_custom_call.1} parent=1 // pred_check_branch
      %39 = sbr.rel (0) target = $region21
    $region20: #{tpu_custom_call.1} parent=1 // pred_region
      %40 = dma.done [#allocation6], 512
    $region21: #{tpu_custom_call.1} parent=1 // pred_fallthru
      _
    %p41 = scmp.eq.s32.totalorder 0, 0
    // Predicated region
    $region22: #{tpu_custom_call.1} parent=1 // pred_check
      %p42 = pneg %p41
    $region23: #{tpu_custom_call.1} parent=1 // pred_check_branch
      %44 = sbr.rel (%p42) target = $region25
    $region24: #{tpu_custom_call.1} parent=1 // pred_region
      %vm45 = vcmask 261120
      %46 = vst.msk [vmem:[#allocation7] sm:$0xff] %vm45, 0.0
    $region25: #{tpu_custom_call.1} parent=1 // pred_fallthru
      _
    %v47 = vld [vmem:[#allocation7] sm:$0xff]
    %v48 = vld [vmem:[#allocation2] sm:$0xff]
    %v49 = vld [vmem:[#allocation5] sm:$0xff]
    %v50 = vld [vmem:[#allocation5 + $0x8] sm:$0xff]
    %v51 = vld [vmem:[#allocation5 + $0x10] sm:$0xff]
    %v52 = vld [vmem:[#allocation5 + $0x18] sm:$0xff]
    %vm53 = vcmask 261120
    %v55 = vsel %vm53, %v48, 0
    %57 = vmatprep.subr.mxu0 0.0
    %58 = vmatpush1.msra.mxu0 0.0
    %59 = vmatprep.subr.mxu0 0.0
    %60 = vmatpush1.msra.mxu0 0.0
    %61 = vmatprep.subr.mxu0 0.0
    %62 = vmatpush1.msra.mxu0 0.0
    %63 = vmatprep.subr.mxu0 0.0
    %64 = vmatpush1.msra.mxu0 0.0
    %65 = vmatprep.subr.mxu0 0.0
    %66 = vmatpush1.msra.mxu0 0.0
    %67 = vmatprep.subr.mxu0 0.0
    %68 = vmatpush1.msra.mxu0 0.0
    %69 = vmatprep.subr.mxu0 0.0
    %70 = vmatpush1.msra.mxu0 0.0
    %71 = vmatprep.subr.mxu0 0.0
    %72 = vmatpush1.msra.mxu0 0.0
    %73 = vmatprep.subr.mxu0 0.0
    %74 = vmatpush1.msra.mxu0 0.0
    %75 = vmatprep.subr.mxu0 0.0
    %76 = vmatpush1.msra.mxu0 0.0
    %77 = vmatprep.subr.mxu0 0.0
    %78 = vmatpush1.msra.mxu0 0.0
    %79 = vmatprep.subr.mxu0 0.0
    %80 = vmatpush1.msra.mxu0 0.0
    %81 = vmatprep.subr.mxu0 0.0
    %82 = vmatpush1.msra.mxu0 %v52
    %83 = vmatprep.subr.mxu0 0.0
    %84 = vmatpush1.msra.mxu0 %v51
    %85 = vmatprep.subr.mxu0 0.0
    %86 = vmatpush1.msra.mxu0 %v50
    %87 = vmatprep.subr.mxu0 0.0
    %88 = vmatpush1.msra.mxu0 %v49
    %89 = vmatprep.subr.mxu0 0.0
    %90 = vmatpush2.msra.mxu0 0.0
    %91 = vmatprep.subr.mxu0 0.0
    %92 = vmatpush2.msra.mxu0 0.0
    %93 = vmatprep.subr.mxu0 0.0
    %94 = vmatpush2.msra.mxu0 0.0
    %95 = vmatprep.subr.mxu0 0.0
    %96 = vmatpush2.msra.mxu0 0.0
    %97 = vmatprep.subr.mxu0 0.0
    %98 = vmatpush2.msra.mxu0 0.0
    %99 = vmatprep.subr.mxu0 0.0
    %100 = vmatpush2.msra.mxu0 0.0
    %101 = vmatprep.subr.mxu0 0.0
    %102 = vmatpush2.msra.mxu0 0.0
    %103 = vmatprep.subr.mxu0 0.0
    %104 = vmatpush2.msra.mxu0 0.0
    %105 = vmatprep.subr.mxu0 0.0
    %106 = vmatpush2.msra.mxu0 0.0
    %107 = vmatprep.subr.mxu0 0.0
    %108 = vmatpush2.msra.mxu0 0.0
    %109 = vmatprep.subr.mxu0 0.0
    %110 = vmatpush2.msra.mxu0 0.0
    %111 = vmatprep.subr.mxu0 0.0
    %112 = vmatpush2.msra.mxu0 0.0
    %113 = vmatprep.subr.mxu0 0.0
    %114 = vmatpush2.msra.mxu0 0.0
    %115 = vmatprep.subr.mxu0 0.0
    %116 = vmatpush2.msra.mxu0 0.0
    %117 = vmatprep.subr.mxu0 0.0
    %118 = vmatpush2.msra.mxu0 0.0
    %119 = vmatprep.subr.mxu0 0.0
    %120 = vmatpush2.msra.mxu0 0.0
    %121 = vmatprep.mubr.f32.mxu0 0.0
    %122 = vmatmul.mubr.f32.gmra.mxu0 %v55
    %v123 = vpop.f32.mrf.mxu0
    %v124 = vadd.f32 0.0, %v123
    %v125 = vpop.f32.mrf.mxu0
    %126 = vdwg.mxu0
    %v127 = vadd.f32 %v47, %v124
    %128 = vst.msk [vmem:[#allocation7] sm:$0xff] %vm53, %v127
    // Predicated region
    $region26: #{tpu_custom_call.1} parent=1 // pred_check
      %p129 = pneg %p41
    $region27: #{tpu_custom_call.1} parent=1 // pred_check_branch
      %131 = sbr.rel (%p129) target = $region29
    $region28: #{tpu_custom_call.1} parent=1 // pred_region
      %v132 = vld [vmem:[#allocation7] sm:$0xff]
      %v133 = vld [vmem:[%s2] sm:$0x1]
      %v135 = vlaneseq
      %v136 = vshrl.u32 %v135, 7
      %v137 = vsub.s32 0, %v136
      %v138 = vrot.slane %v133, %v137
      %v140 = vadd.f32 %v132, %v138
      %v141 = vmul.f32 %v140, 0.5
      %v142 = vtanh.pop %v141
      %v143 = vadd.f32 %v142, 1.0
      %v144 = vmul.f32 %v143, 0.5
      %145 = vst.msk [vmem:[#allocation7] sm:$0xff] %vm53, %v144
    $region29: #{tpu_custom_call.1} parent=1 // pred_fallthru
      _
    // Predicated region
    $region30: #{tpu_custom_call.1} parent=1 // pred_check
      _
    $region31: #{tpu_custom_call.1} parent=1 // pred_check_branch
      %147 = sbr.rel (0) target = $region33
    $region32: #{tpu_custom_call.1} parent=1 // pred_region
      %s149 = ssub.s32 128, 128
      %150 = vsyncadd [#allocation4], %s149
      %s152 = sshll.u32 [#allocation7], 4
      %s153 = int_to_ptr.vmem [resolvable:$true] %s152
      %155 = dma.vmem_to_hbm [thread:$0]  %s153, 128, %s3, [#allocation4]
    $region33: #{tpu_custom_call.1} parent=1 // pred_fallthru
      _
    // Predicated region
    $region34: #{tpu_custom_call.1} parent=1 // pred_check
      _
    $region35: #{tpu_custom_call.1} parent=1 // pred_check_branch
      %157 = sbr.rel (0) target = $region37
    $region36: #{tpu_custom_call.1} parent=1 // pred_region
      %158 = dma.done [#allocation4], 128
    $region37: #{tpu_custom_call.1} parent=1 // pred_fallthru
      _
    %159 = vsyncpa [#allocation3], 1
    %160 = vsyncpa [#allocation6], 1
    %161 = vsyncpa [#allocation4], 1

</llo_original>
